<compile_context>
chip_gen: v5e
topology: v5e:2x2
jax: 0.10.0
libtpu: 0.0.40
codegen_flags: <defaults>
</compile_context>

<pallas_src>
import functools

import jax
import jax.numpy as jnp
from jax import lax
from jax.experimental import pallas as pl
from jax.experimental.pallas import tpu as pltpu


def _dc_pc_kernel(x_ref, dww_ref, pww_ref, pwb_ref, o_ref,
                  *, C, O, H, W, SB, TB):
    # x_ref   : (TB, C*H*W) VMEM   input tile (lane-dense, channel-major)
    # dww_ref : (C, 9)      SMEM   depthwise weights, tap = ky*3 + kx
    # pww_ref : (O, C)      SMEM   pointwise weights
    # pwb_ref : (O,)        SMEM   fused bias = pw_b + pw_w @ dw_b
    # o_ref   : (TB, O*H*W) VMEM   output tile (lane-dense, channel-major)
    HW = H * W

    # Boundary masks, built once per grid step (depend only on the lane index
    # p = y*W + x of the flattened image).
    lane = lax.broadcasted_iota(jnp.int32, (SB, HW), 1)
    col = lane % W
    mx_m = jnp.where(col > 0, 1.0, 0.0)              # x-1 exists
    mx_p = jnp.where(col < W - 1, 1.0, 0.0)          # x+1 exists
    my_m = jnp.where(lane >= W, 1.0, 0.0)            # y-1 exists
    my_p = jnp.where(lane < (H - 1) * W, 1.0, 0.0)   # y+1 exists

    def process(b0):
        b_sl = pl.ds(b0, SB)
        pacc = [None] * O
        for c in range(C):
            xc = x_ref[b_sl, pl.ds(c * HW, HW)].astype(jnp.float32)  # (SB, HW)
            # Hoisted horizontal (kx) shifts: XLU lane rotates; wrap positions
            # are exactly the row-edge positions killed by the x masks.
            h_m = pltpu.roll(xc, 1, 1) * mx_m            # value at x-1
            h_p = pltpu.roll(xc, HW - 1, 1) * mx_p       # value at x+1
            # Horizontal tap combination per kernel row ky (dy = ky - 1).
            r0 = h_m * dww_ref[c, 0] + xc * dww_ref[c, 1] + h_p * dww_ref[c, 2]
            r1 = h_m * dww_ref[c, 3] + xc * dww_ref[c, 4] + h_p * dww_ref[c, 5]
            r2 = h_m * dww_ref[c, 6] + xc * dww_ref[c, 7] + h_p * dww_ref[c, 8]
            # Vertical (ky) shift by one image row; wrap killed by the y masks.
            dw_c = (r1
                    + my_m * pltpu.roll(r0, W, 1)
                    + my_p * pltpu.roll(r2, HW - W, 1))
            # Stream this depthwise channel into the O pointwise accumulators
            # (bounded live ranges; no C full planes held simultaneously).
            for o in range(O):
                t = dw_c * pww_ref[o, c]
                pacc[o] = t if c == 0 else pacc[o] + t
        for o in range(O):
            # Aligned, unmasked lane-dense store (offset is a multiple of HW).
            o_ref[b_sl, pl.ds(o * HW, HW)] = (pacc[o] + pwb_ref[o]).astype(o_ref.dtype)

    n_chunks = TB // SB
    if n_chunks == 1:
        process(0)
    else:
        def body(i, carry):
            process(pl.multiple_of(i * SB, SB))
            return carry
        lax.fori_loop(0, n_chunks, body, 0)


def _pick_tile_batch(N, C, H, W, O):
    """Images per grid step: >=~512 KiB input per step, bounded tile size."""
    in_img = 4 * C * H * W
    io_img = 4 * (C + O) * H * W
    lo = max(1, (512 * 1024) // in_img)            # amortize per-step overhead
    hi = max(1, (8 * 1024 * 1024) // io_img)       # keep 2x(in+out) << v7x VMEM
    target = min(lo, hi)
    if N <= target:
        return N
    best = None
    for tb in range(8, target + 1, 8):             # keep sublane-dim multiple of 8
        if N % tb == 0:
            best = tb
    return best if best is not None else N


def dc_pc_forward(x_nchw, dw_w, dw_b, pw_w, pw_b):
    """Forward of DC_PC.

    x_nchw: (N, C, H, W)
    dw_w  : (C, 1, 3, 3)  depthwise conv weight (PyTorch layout)
    dw_b  : (C,)          depthwise bias
    pw_w  : (O, C, 1, 1)  pointwise conv weight (PyTorch layout)
    pw_b  : (O,)          pointwise bias
    returns (N, O, H, W) float32
    """
    N, C, H, W = x_nchw.shape
    O = pw_w.shape[0]
    HW = H * W

    x_flat = x_nchw.reshape(N, C * HW)                        # free, contiguous
    dww = dw_w.reshape(C, 9).astype(jnp.float32)              # (C, 9)
    pww = pw_w.reshape(O, C).astype(jnp.float32)              # (O, C)
    # Fold the depthwise bias into the pointwise bias (mathematically exact).
    pwb = pw_b.astype(jnp.float32) + pww @ dw_b.astype(jnp.float32)  # (O,)

    TB = _pick_tile_batch(N, C, H, W, O)
    SB = 8
    while TB % SB != 0:
        SB //= 2

    flops = N * HW * C * (2 * 9 + 2 * O)
    bytes_accessed = 4 * (N * C * HW + N * O * HW + C * 9 + O * C + O)

    kernel = functools.partial(_dc_pc_kernel, C=C, O=O, H=H, W=W, SB=SB, TB=TB)

    out_flat = pl.pallas_call(
        kernel,
        out_shape=jax.ShapeDtypeStruct((N, O * HW), jnp.float32),
        grid_spec=pltpu.PrefetchScalarGridSpec(
            num_scalar_prefetch=0,
            grid=(N // TB,),
            in_specs=[
                pl.BlockSpec((TB, C * HW), lambda n: (n, 0)),
                pl.BlockSpec(memory_space=pltpu.MemorySpace.SMEM),
                pl.BlockSpec(memory_space=pltpu.MemorySpace.SMEM),
                pl.BlockSpec(memory_space=pltpu.MemorySpace.SMEM),
            ],
            out_specs=pl.BlockSpec((TB, O * HW), lambda n: (n, 0)),
        ),
        compiler_params=pltpu.CompilerParams(
            dimension_semantics=("parallel",),
            # Tiles here are a few MiB at most; 32 MiB is safe on v5e/v6e/v7x.
            vmem_limit_bytes=32 * 1024 * 1024,
        ),
        cost_estimate=pl.CostEstimate(
            flops=flops, transcendentals=0, bytes_accessed=bytes_accessed),
    )(x_flat, dww, pww, pwb)

    return out_flat.reshape(N, O, H, W)


def _reference(x_nchw, dw_w, dw_b, pw_w, pw_b):
    """Pure-JAX reference (lax convs) matching PyTorch semantics."""
    C = x_nchw.shape[1]
    dn = ("NCHW", "OIHW", "NCHW")
    out = lax.conv_general_dilated(
        x_nchw, dw_w, window_strides=(1, 1), padding=((1, 1), (1, 1)),
        dimension_numbers=dn, feature_group_count=C)
    out = out + dw_b.reshape(1, C, 1, 1)
    out2 = lax.conv_general_dilated(
        out, pw_w, window_strides=(1, 1), padding=((0, 0), (0, 0)),
        dimension_numbers=dn)
    return out2 + pw_b.reshape(1, -1, 1, 1)


if __name__ == "__main__":
    N, C, H, W, O = 2, 4, 16, 16, 8

    key = jax.random.PRNGKey(0)
    k1, k2, k3, k4, k5 = jax.random.split(key, 5)

    x = jax.random.normal(k1, (N, C, H, W), dtype=jnp.float32)
    dw_w = jax.random.normal(k2, (C, 1, 3, 3), dtype=jnp.float32) * 0.1
    dw_b = jax.random.normal(k3, (C,), dtype=jnp.float32) * 0.1
    pw_w = jax.random.normal(k4, (O, C, 1, 1), dtype=jnp.float32) * 0.1
    pw_b = jax.random.normal(k5, (O,), dtype=jnp.float32) * 0.1

    out = jax.block_until_ready(dc_pc_forward(x, dw_w, dw_b, pw_w, pw_b))

    ref = _reference(x, dw_w, dw_b, pw_w, pw_b)
    assert out.shape == (N, O, H, W)
    assert jnp.allclose(out, ref, atol=1e-4, rtol=1e-4), "mismatch vs reference"

    print("KERNEL_OK")
</pallas_src>

<mosaic_0001>
module attributes {stable_mosaic.version = 11 : i64} {
  func.func @_dc_pc_kernel(%arg0: i32, %arg1: memref<2x1024xf32, #tpu.memory_space<vmem>>, %arg2: memref<4x9xf32, #tpu.memory_space<smem>>, %arg3: memref<8x4xf32, #tpu.memory_space<smem>>, %arg4: memref<8xf32, #tpu.memory_space<smem>>, %arg5: memref<2x2048xf32, #tpu.memory_space<vmem>>) attributes {dimension_semantics = [#tpu.dimension_semantics<parallel>], iteration_bounds = array<i64: 1>, scalar_prefetch = 0 : i64, scratch_operands = 0 : i64, tpu.core_type = #tpu.core_type<tc>, window_params = [{transform_indices = @transform_0, window_bounds = array<i64: 2, 1024>}, {transform_indices = @transform_1, window_bounds = array<i64: 4, 9>}, {transform_indices = @transform_2, window_bounds = array<i64: 8, 4>}, {transform_indices = @transform_3, window_bounds = array<i64: 8>}, {transform_indices = @transform_4, window_bounds = array<i64: 2, 2048>}]} {
    %0 = tpu.iota {dimensions = array<i32: 1>} : vector<2x256xi32>
    %c16_i32 = arith.constant 16 : i32
    %c0_i32 = arith.constant 0 : i32
    %1 = arith.cmpi eq, %c16_i32, %c0_i32 : i32
    %c1_i32 = arith.constant 1 : i32
    %2 = arith.select %1, %c1_i32, %c16_i32 : i32
    %3 = vector.broadcast %2 : i32 to vector<2x256xi32>
    %4 = arith.remsi %0, %3 : vector<2x256xi32>
    %c0_i32_0 = arith.constant 0 : i32
    %5 = vector.broadcast %c0_i32_0 : i32 to vector<2x256xi32>
    %6 = arith.cmpi ne, %4, %5 : vector<2x256xi32>
    %c0_i32_1 = arith.constant 0 : i32
    %7 = vector.broadcast %c0_i32_1 : i32 to vector<2x256xi32>
    %8 = arith.cmpi slt, %4, %7 : vector<2x256xi32>
    %c0_i32_2 = arith.constant 0 : i32
    %9 = arith.cmpi slt, %2, %c0_i32_2 : i32
    %10 = vector.broadcast %9 : i1 to vector<2x256xi1>
    %11 = vector.broadcast %10 : vector<2x256xi1> to vector<2x256xi1>
    %12 = arith.xori %8, %11 : vector<2x256xi1>
    %13 = arith.andi %12, %6 : vector<2x256xi1>
    %14 = vector.broadcast %2 : i32 to vector<2x256xi32>
    %15 = arith.addi %4, %14 : vector<2x256xi32>
    %16 = arith.select %13, %15, %4 : vector<2x256xi1>, vector<2x256xi32>
    %c0_i32_3 = arith.constant 0 : i32
    %17 = vector.broadcast %c0_i32_3 : i32 to vector<2x256xi32>
    %18 = arith.cmpi sgt, %16, %17 : vector<2x256xi32>
    %cst = arith.constant 1.000000e+00 : f32
    %cst_4 = arith.constant 0.000000e+00 : f32
    %19 = vector.broadcast %cst : f32 to vector<2x256xf32>
    %20 = vector.broadcast %cst_4 : f32 to vector<2x256xf32>
    %21 = arith.select %18, %19, %20 : vector<2x256xi1>, vector<2x256xf32>
    %c15_i32 = arith.constant 15 : i32
    %22 = vector.broadcast %c15_i32 : i32 to vector<2x256xi32>
    %23 = arith.cmpi slt, %16, %22 : vector<2x256xi32>
    %cst_5 = arith.constant 1.000000e+00 : f32
    %cst_6 = arith.constant 0.000000e+00 : f32
    %24 = vector.broadcast %cst_5 : f32 to vector<2x256xf32>
    %25 = vector.broadcast %cst_6 : f32 to vector<2x256xf32>
    %26 = arith.select %23, %24, %25 : vector<2x256xi1>, vector<2x256xf32>
    %c16_i32_7 = arith.constant 16 : i32
    %27 = vector.broadcast %c16_i32_7 : i32 to vector<2x256xi32>
    %28 = arith.cmpi sge, %0, %27 : vector<2x256xi32>
    %cst_8 = arith.constant 1.000000e+00 : f32
    %cst_9 = arith.constant 0.000000e+00 : f32
    %29 = vector.broadcast %cst_8 : f32 to vector<2x256xf32>
    %30 = vector.broadcast %cst_9 : f32 to vector<2x256xf32>
    %31 = arith.select %28, %29, %30 : vector<2x256xi1>, vector<2x256xf32>
    %c240_i32 = arith.constant 240 : i32
    %32 = vector.broadcast %c240_i32 : i32 to vector<2x256xi32>
    %33 = arith.cmpi slt, %0, %32 : vector<2x256xi32>
    %cst_10 = arith.constant 1.000000e+00 : f32
    %cst_11 = arith.constant 0.000000e+00 : f32
    %34 = vector.broadcast %cst_10 : f32 to vector<2x256xf32>
    %35 = vector.broadcast %cst_11 : f32 to vector<2x256xf32>
    %36 = arith.select %33, %34, %35 : vector<2x256xi1>, vector<2x256xf32>
    %c0 = arith.constant 0 : index
    %c0_12 = arith.constant 0 : index
    %37 = vector.load %arg1[%c0, %c0_12] : memref<2x1024xf32, #tpu.memory_space<vmem>>, vector<2x256xf32>
    %c1_i32_13 = arith.constant 1 : i32
    %38 = tpu.dynamic_rotate %37 by %c1_i32_13 dim 1 : vector<2x256xf32>, i32 -> vector<2x256xf32>
    %39 = arith.mulf %38, %21 : vector<2x256xf32>
    %c255_i32 = arith.constant 255 : i32
    %40 = tpu.dynamic_rotate %37 by %c255_i32 dim 1 : vector<2x256xf32>, i32 -> vector<2x256xf32>
    %41 = arith.mulf %40, %26 : vector<2x256xf32>
    %c0_14 = arith.constant 0 : index
    %c0_15 = arith.constant 0 : index
    %42 = memref.load %arg2[%c0_14, %c0_15] : memref<4x9xf32, #tpu.memory_space<smem>>
    %43 = vector.broadcast %42 : f32 to vector<2x256xf32>
    %44 = arith.mulf %39, %43 : vector<2x256xf32>
    %c0_16 = arith.constant 0 : index
    %c1 = arith.constant 1 : index
    %45 = memref.load %arg2[%c0_16, %c1] : memref<4x9xf32, #tpu.memory_space<smem>>
    %46 = vector.broadcast %45 : f32 to vector<2x256xf32>
    %47 = arith.mulf %37, %46 : vector<2x256xf32>
    %48 = arith.addf %44, %47 : vector<2x256xf32>
    %c0_17 = arith.constant 0 : index
    %c2 = arith.constant 2 : index
    %49 = memref.load %arg2[%c0_17, %c2] : memref<4x9xf32, #tpu.memory_space<smem>>
    %50 = vector.broadcast %49 : f32 to vector<2x256xf32>
    %51 = arith.mulf %41, %50 : vector<2x256xf32>
    %52 = arith.addf %48, %51 : vector<2x256xf32>
    %c0_18 = arith.constant 0 : index
    %c3 = arith.constant 3 : index
    %53 = memref.load %arg2[%c0_18, %c3] : memref<4x9xf32, #tpu.memory_space<smem>>
    %54 = vector.broadcast %53 : f32 to vector<2x256xf32>
    %55 = arith.mulf %39, %54 : vector<2x256xf32>
    %c0_19 = arith.constant 0 : index
    %c4 = arith.constant 4 : index
    %56 = memref.load %arg2[%c0_19, %c4] : memref<4x9xf32, #tpu.memory_space<smem>>
    %57 = vector.broadcast %56 : f32 to vector<2x256xf32>
    %58 = arith.mulf %37, %57 : vector<2x256xf32>
    %59 = arith.addf %55, %58 : vector<2x256xf32>
    %c0_20 = arith.constant 0 : index
    %c5 = arith.constant 5 : index
    %60 = memref.load %arg2[%c0_20, %c5] : memref<4x9xf32, #tpu.memory_space<smem>>
    %61 = vector.broadcast %60 : f32 to vector<2x256xf32>
    %62 = arith.mulf %41, %61 : vector<2x256xf32>
    %63 = arith.addf %59, %62 : vector<2x256xf32>
    %c0_21 = arith.constant 0 : index
    %c6 = arith.constant 6 : index
    %64 = memref.load %arg2[%c0_21, %c6] : memref<4x9xf32, #tpu.memory_space<smem>>
    %65 = vector.broadcast %64 : f32 to vector<2x256xf32>
    %66 = arith.mulf %39, %65 : vector<2x256xf32>
    %c0_22 = arith.constant 0 : index
    %c7 = arith.constant 7 : index
    %67 = memref.load %arg2[%c0_22, %c7] : memref<4x9xf32, #tpu.memory_space<smem>>
    %68 = vector.broadcast %67 : f32 to vector<2x256xf32>
    %69 = arith.mulf %37, %68 : vector<2x256xf32>
    %70 = arith.addf %66, %69 : vector<2x256xf32>
    %c0_23 = arith.constant 0 : index
    %c8 = arith.constant 8 : index
    %71 = memref.load %arg2[%c0_23, %c8] : memref<4x9xf32, #tpu.memory_space<smem>>
    %72 = vector.broadcast %71 : f32 to vector<2x256xf32>
    %73 = arith.mulf %41, %72 : vector<2x256xf32>
    %74 = arith.addf %70, %73 : vector<2x256xf32>
    %c16_i32_24 = arith.constant 16 : i32
    %75 = tpu.dynamic_rotate %52 by %c16_i32_24 dim 1 : vector<2x256xf32>, i32 -> vector<2x256xf32>
    %76 = arith.mulf %31, %75 : vector<2x256xf32>
    %77 = arith.addf %63, %76 : vector<2x256xf32>
    %c240_i32_25 = arith.constant 240 : i32
    %78 = tpu.dynamic_rotate %74 by %c240_i32_25 dim 1 : vector<2x256xf32>, i32 -> vector<2x256xf32>
    %79 = arith.mulf %36, %78 : vector<2x256xf32>
    %80 = arith.addf %77, %79 : vector<2x256xf32>
    %c0_26 = arith.constant 0 : index
    %c0_27 = arith.constant 0 : index
    %81 = memref.load %arg3[%c0_26, %c0_27] : memref<8x4xf32, #tpu.memory_space<smem>>
    %82 = vector.broadcast %81 : f32 to vector<2x256xf32>
    %83 = arith.mulf %80, %82 : vector<2x256xf32>
    %c1_28 = arith.constant 1 : index
    %c0_29 = arith.constant 0 : index
    %84 = memref.load %arg3[%c1_28, %c0_29] : memref<8x4xf32, #tpu.memory_space<smem>>
    %85 = vector.broadcast %84 : f32 to vector<2x256xf32>
    %86 = arith.mulf %80, %85 : vector<2x256xf32>
    %c2_30 = arith.constant 2 : index
    %c0_31 = arith.constant 0 : index
    %87 = memref.load %arg3[%c2_30, %c0_31] : memref<8x4xf32, #tpu.memory_space<smem>>
    %88 = vector.broadcast %87 : f32 to vector<2x256xf32>
    %89 = arith.mulf %80, %88 : vector<2x256xf32>
    %c3_32 = arith.constant 3 : index
    %c0_33 = arith.constant 0 : index
    %90 = memref.load %arg3[%c3_32, %c0_33] : memref<8x4xf32, #tpu.memory_space<smem>>
    %91 = vector.broadcast %90 : f32 to vector<2x256xf32>
    %92 = arith.mulf %80, %91 : vector<2x256xf32>
    %c4_34 = arith.constant 4 : index
    %c0_35 = arith.constant 0 : index
    %93 = memref.load %arg3[%c4_34, %c0_35] : memref<8x4xf32, #tpu.memory_space<smem>>
    %94 = vector.broadcast %93 : f32 to vector<2x256xf32>
    %95 = arith.mulf %80, %94 : vector<2x256xf32>
    %c5_36 = arith.constant 5 : index
    %c0_37 = arith.constant 0 : index
    %96 = memref.load %arg3[%c5_36, %c0_37] : memref<8x4xf32, #tpu.memory_space<smem>>
    %97 = vector.broadcast %96 : f32 to vector<2x256xf32>
    %98 = arith.mulf %80, %97 : vector<2x256xf32>
    %c6_38 = arith.constant 6 : index
    %c0_39 = arith.constant 0 : index
    %99 = memref.load %arg3[%c6_38, %c0_39] : memref<8x4xf32, #tpu.memory_space<smem>>
    %100 = vector.broadcast %99 : f32 to vector<2x256xf32>
    %101 = arith.mulf %80, %100 : vector<2x256xf32>
    %c7_40 = arith.constant 7 : index
    %c0_41 = arith.constant 0 : index
    %102 = memref.load %arg3[%c7_40, %c0_41] : memref<8x4xf32, #tpu.memory_space<smem>>
    %103 = vector.broadcast %102 : f32 to vector<2x256xf32>
    %104 = arith.mulf %80, %103 : vector<2x256xf32>
    %c0_42 = arith.constant 0 : index
    %c256 = arith.constant 256 : index
    %105 = vector.load %arg1[%c0_42, %c256] : memref<2x1024xf32, #tpu.memory_space<vmem>>, vector<2x256xf32>
    %c1_i32_43 = arith.constant 1 : i32
    %106 = tpu.dynamic_rotate %105 by %c1_i32_43 dim 1 : vector<2x256xf32>, i32 -> vector<2x256xf32>
    %107 = arith.mulf %106, %21 : vector<2x256xf32>
    %c255_i32_44 = arith.constant 255 : i32
    %108 = tpu.dynamic_rotate %105 by %c255_i32_44 dim 1 : vector<2x256xf32>, i32 -> vector<2x256xf32>
    %109 = arith.mulf %108, %26 : vector<2x256xf32>
    %c1_45 = arith.constant 1 : index
    %c0_46 = arith.constant 0 : index
    %110 = memref.load %arg2[%c1_45, %c0_46] : memref<4x9xf32, #tpu.memory_space<smem>>
    %111 = vector.broadcast %110 : f32 to vector<2x256xf32>
    %112 = arith.mulf %107, %111 : vector<2x256xf32>
    %c1_47 = arith.constant 1 : index
    %c1_48 = arith.constant 1 : index
    %113 = memref.load %arg2[%c1_47, %c1_48] : memref<4x9xf32, #tpu.memory_space<smem>>
    %114 = vector.broadcast %113 : f32 to vector<2x256xf32>
    %115 = arith.mulf %105, %114 : vector<2x256xf32>
    %116 = arith.addf %112, %115 : vector<2x256xf32>
    %c1_49 = arith.constant 1 : index
    %c2_50 = arith.constant 2 : index
    %117 = memref.load %arg2[%c1_49, %c2_50] : memref<4x9xf32, #tpu.memory_space<smem>>
    %118 = vector.broadcast %117 : f32 to vector<2x256xf32>
    %119 = arith.mulf %109, %118 : vector<2x256xf32>
    %120 = arith.addf %116, %119 : vector<2x256xf32>
    %c1_51 = arith.constant 1 : index
    %c3_52 = arith.constant 3 : index
    %121 = memref.load %arg2[%c1_51, %c3_52] : memref<4x9xf32, #tpu.memory_space<smem>>
    %122 = vector.broadcast %121 : f32 to vector<2x256xf32>
    %123 = arith.mulf %107, %122 : vector<2x256xf32>
    %c1_53 = arith.constant 1 : index
    %c4_54 = arith.constant 4 : index
    %124 = memref.load %arg2[%c1_53, %c4_54] : memref<4x9xf32, #tpu.memory_space<smem>>
    %125 = vector.broadcast %124 : f32 to vector<2x256xf32>
    %126 = arith.mulf %105, %125 : vector<2x256xf32>
    %127 = arith.addf %123, %126 : vector<2x256xf32>
    %c1_55 = arith.constant 1 : index
    %c5_56 = arith.constant 5 : index
    %128 = memref.load %arg2[%c1_55, %c5_56] : memref<4x9xf32, #tpu.memory_space<smem>>
    %129 = vector.broadcast %128 : f32 to vector<2x256xf32>
    %130 = arith.mulf %109, %129 : vector<2x256xf32>
    %131 = arith.addf %127, %130 : vector<2x256xf32>
    %c1_57 = arith.constant 1 : index
    %c6_58 = arith.constant 6 : index
    %132 = memref.load %arg2[%c1_57, %c6_58] : memref<4x9xf32, #tpu.memory_space<smem>>
    %133 = vector.broadcast %132 : f32 to vector<2x256xf32>
    %134 = arith.mulf %107, %133 : vector<2x256xf32>
    %c1_59 = arith.constant 1 : index
    %c7_60 = arith.constant 7 : index
    %135 = memref.load %arg2[%c1_59, %c7_60] : memref<4x9xf32, #tpu.memory_space<smem>>
    %136 = vector.broadcast %135 : f32 to vector<2x256xf32>
    %137 = arith.mulf %105, %136 : vector<2x256xf32>
    %138 = arith.addf %134, %137 : vector<2x256xf32>
    %c1_61 = arith.constant 1 : index
    %c8_62 = arith.constant 8 : index
    %139 = memref.load %arg2[%c1_61, %c8_62] : memref<4x9xf32, #tpu.memory_space<smem>>
    %140 = vector.broadcast %139 : f32 to vector<2x256xf32>
    %141 = arith.mulf %109, %140 : vector<2x256xf32>
    %142 = arith.addf %138, %141 : vector<2x256xf32>
    %c16_i32_63 = arith.constant 16 : i32
    %143 = tpu.dynamic_rotate %120 by %c16_i32_63 dim 1 : vector<2x256xf32>, i32 -> vector<2x256xf32>
    %144 = arith.mulf %31, %143 : vector<2x256xf32>
    %145 = arith.addf %131, %144 : vector<2x256xf32>
    %c240_i32_64 = arith.constant 240 : i32
    %146 = tpu.dynamic_rotate %142 by %c240_i32_64 dim 1 : vector<2x256xf32>, i32 -> vector<2x256xf32>
    %147 = arith.mulf %36, %146 : vector<2x256xf32>
    %148 = arith.addf %145, %147 : vector<2x256xf32>
    %c0_65 = arith.constant 0 : index
    %c1_66 = arith.constant 1 : index
    %149 = memref.load %arg3[%c0_65, %c1_66] : memref<8x4xf32, #tpu.memory_space<smem>>
    %150 = vector.broadcast %149 : f32 to vector<2x256xf32>
    %151 = arith.mulf %148, %150 : vector<2x256xf32>
    %152 = arith.addf %83, %151 : vector<2x256xf32>
    %c1_67 = arith.constant 1 : index
    %c1_68 = arith.constant 1 : index
    %153 = memref.load %arg3[%c1_67, %c1_68] : memref<8x4xf32, #tpu.memory_space<smem>>
    %154 = vector.broadcast %153 : f32 to vector<2x256xf32>
    %155 = arith.mulf %148, %154 : vector<2x256xf32>
    %156 = arith.addf %86, %155 : vector<2x256xf32>
    %c2_69 = arith.constant 2 : index
    %c1_70 = arith.constant 1 : index
    %157 = memref.load %arg3[%c2_69, %c1_70] : memref<8x4xf32, #tpu.memory_space<smem>>
    %158 = vector.broadcast %157 : f32 to vector<2x256xf32>
    %159 = arith.mulf %148, %158 : vector<2x256xf32>
    %160 = arith.addf %89, %159 : vector<2x256xf32>
    %c3_71 = arith.constant 3 : index
    %c1_72 = arith.constant 1 : index
    %161 = memref.load %arg3[%c3_71, %c1_72] : memref<8x4xf32, #tpu.memory_space<smem>>
    %162 = vector.broadcast %161 : f32 to vector<2x256xf32>
    %163 = arith.mulf %148, %162 : vector<2x256xf32>
    %164 = arith.addf %92, %163 : vector<2x256xf32>
    %c4_73 = arith.constant 4 : index
    %c1_74 = arith.constant 1 : index
    %165 = memref.load %arg3[%c4_73, %c1_74] : memref<8x4xf32, #tpu.memory_space<smem>>
    %166 = vector.broadcast %165 : f32 to vector<2x256xf32>
    %167 = arith.mulf %148, %166 : vector<2x256xf32>
    %168 = arith.addf %95, %167 : vector<2x256xf32>
    %c5_75 = arith.constant 5 : index
    %c1_76 = arith.constant 1 : index
    %169 = memref.load %arg3[%c5_75, %c1_76] : memref<8x4xf32, #tpu.memory_space<smem>>
    %170 = vector.broadcast %169 : f32 to vector<2x256xf32>
    %171 = arith.mulf %148, %170 : vector<2x256xf32>
    %172 = arith.addf %98, %171 : vector<2x256xf32>
    %c6_77 = arith.constant 6 : index
    %c1_78 = arith.constant 1 : index
    %173 = memref.load %arg3[%c6_77, %c1_78] : memref<8x4xf32, #tpu.memory_space<smem>>
    %174 = vector.broadcast %173 : f32 to vector<2x256xf32>
    %175 = arith.mulf %148, %174 : vector<2x256xf32>
    %176 = arith.addf %101, %175 : vector<2x256xf32>
    %c7_79 = arith.constant 7 : index
    %c1_80 = arith.constant 1 : index
    %177 = memref.load %arg3[%c7_79, %c1_80] : memref<8x4xf32, #tpu.memory_space<smem>>
    %178 = vector.broadcast %177 : f32 to vector<2x256xf32>
    %179 = arith.mulf %148, %178 : vector<2x256xf32>
    %180 = arith.addf %104, %179 : vector<2x256xf32>
    %c0_81 = arith.constant 0 : index
    %c512 = arith.constant 512 : index
    %181 = vector.load %arg1[%c0_81, %c512] : memref<2x1024xf32, #tpu.memory_space<vmem>>, vector<2x256xf32>
    %c1_i32_82 = arith.constant 1 : i32
    %182 = tpu.dynamic_rotate %181 by %c1_i32_82 dim 1 : vector<2x256xf32>, i32 -> vector<2x256xf32>
    %183 = arith.mulf %182, %21 : vector<2x256xf32>
    %c255_i32_83 = arith.constant 255 : i32
    %184 = tpu.dynamic_rotate %181 by %c255_i32_83 dim 1 : vector<2x256xf32>, i32 -> vector<2x256xf32>
    %185 = arith.mulf %184, %26 : vector<2x256xf32>
    %c2_84 = arith.constant 2 : index
    %c0_85 = arith.constant 0 : index
    %186 = memref.load %arg2[%c2_84, %c0_85] : memref<4x9xf32, #tpu.memory_space<smem>>
    %187 = vector.broadcast %186 : f32 to vector<2x256xf32>
    %188 = arith.mulf %183, %187 : vector<2x256xf32>
    %c2_86 = arith.constant 2 : index
    %c1_87 = arith.constant 1 : index
    %189 = memref.load %arg2[%c2_86, %c1_87] : memref<4x9xf32, #tpu.memory_space<smem>>
    %190 = vector.broadcast %189 : f32 to vector<2x256xf32>
    %191 = arith.mulf %181, %190 : vector<2x256xf32>
    %192 = arith.addf %188, %191 : vector<2x256xf32>
    %c2_88 = arith.constant 2 : index
    %c2_89 = arith.constant 2 : index
    %193 = memref.load %arg2[%c2_88, %c2_89] : memref<4x9xf32, #tpu.memory_space<smem>>
    %194 = vector.broadcast %193 : f32 to vector<2x256xf32>
    %195 = arith.mulf %185, %194 : vector<2x256xf32>
    %196 = arith.addf %192, %195 : vector<2x256xf32>
    %c2_90 = arith.constant 2 : index
    %c3_91 = arith.constant 3 : index
    %197 = memref.load %arg2[%c2_90, %c3_91] : memref<4x9xf32, #tpu.memory_space<smem>>
    %198 = vector.broadcast %197 : f32 to vector<2x256xf32>
    %199 = arith.mulf %183, %198 : vector<2x256xf32>
    %c2_92 = arith.constant 2 : index
    %c4_93 = arith.constant 4 : index
    %200 = memref.load %arg2[%c2_92, %c4_93] : memref<4x9xf32, #tpu.memory_space<smem>>
    %201 = vector.broadcast %200 : f32 to vector<2x256xf32>
    %202 = arith.mulf %181, %201 : vector<2x256xf32>
    %203 = arith.addf %199, %202 : vector<2x256xf32>
    %c2_94 = arith.constant 2 : index
    %c5_95 = arith.constant 5 : index
    %204 = memref.load %arg2[%c2_94, %c5_95] : memref<4x9xf32, #tpu.memory_space<smem>>
    %205 = vector.broadcast %204 : f32 to vector<2x256xf32>
    %206 = arith.mulf %185, %205 : vector<2x256xf32>
    %207 = arith.addf %203, %206 : vector<2x256xf32>
    %c2_96 = arith.constant 2 : index
    %c6_97 = arith.constant 6 : index
    %208 = memref.load %arg2[%c2_96, %c6_97] : memref<4x9xf32, #tpu.memory_space<smem>>
    %209 = vector.broadcast %208 : f32 to vector<2x256xf32>
    %210 = arith.mulf %183, %209 : vector<2x256xf32>
    %c2_98 = arith.constant 2 : index
    %c7_99 = arith.constant 7 : index
    %211 = memref.load %arg2[%c2_98, %c7_99] : memref<4x9xf32, #tpu.memory_space<smem>>
    %212 = vector.broadcast %211 : f32 to vector<2x256xf32>
    %213 = arith.mulf %181, %212 : vector<2x256xf32>
    %214 = arith.addf %210, %213 : vector<2x256xf32>
    %c2_100 = arith.constant 2 : index
    %c8_101 = arith.constant 8 : index
    %215 = memref.load %arg2[%c2_100, %c8_101] : memref<4x9xf32, #tpu.memory_space<smem>>
    %216 = vector.broadcast %215 : f32 to vector<2x256xf32>
    %217 = arith.mulf %185, %216 : vector<2x256xf32>
    %218 = arith.addf %214, %217 : vector<2x256xf32>
    %c16_i32_102 = arith.constant 16 : i32
    %219 = tpu.dynamic_rotate %196 by %c16_i32_102 dim 1 : vector<2x256xf32>, i32 -> vector<2x256xf32>
    %220 = arith.mulf %31, %219 : vector<2x256xf32>
    %221 = arith.addf %207, %220 : vector<2x256xf32>
    %c240_i32_103 = arith.constant 240 : i32
    %222 = tpu.dynamic_rotate %218 by %c240_i32_103 dim 1 : vector<2x256xf32>, i32 -> vector<2x256xf32>
    %223 = arith.mulf %36, %222 : vector<2x256xf32>
    %224 = arith.addf %221, %223 : vector<2x256xf32>
    %c0_104 = arith.constant 0 : index
    %c2_105 = arith.constant 2 : index
    %225 = memref.load %arg3[%c0_104, %c2_105] : memref<8x4xf32, #tpu.memory_space<smem>>
    %226 = vector.broadcast %225 : f32 to vector<2x256xf32>
    %227 = arith.mulf %224, %226 : vector<2x256xf32>
    %228 = arith.addf %152, %227 : vector<2x256xf32>
    %c1_106 = arith.constant 1 : index
    %c2_107 = arith.constant 2 : index
    %229 = memref.load %arg3[%c1_106, %c2_107] : memref<8x4xf32, #tpu.memory_space<smem>>
    %230 = vector.broadcast %229 : f32 to vector<2x256xf32>
    %231 = arith.mulf %224, %230 : vector<2x256xf32>
    %232 = arith.addf %156, %231 : vector<2x256xf32>
    %c2_108 = arith.constant 2 : index
    %c2_109 = arith.constant 2 : index
    %233 = memref.load %arg3[%c2_108, %c2_109] : memref<8x4xf32, #tpu.memory_space<smem>>
    %234 = vector.broadcast %233 : f32 to vector<2x256xf32>
    %235 = arith.mulf %224, %234 : vector<2x256xf32>
    %236 = arith.addf %160, %235 : vector<2x256xf32>
    %c3_110 = arith.constant 3 : index
    %c2_111 = arith.constant 2 : index
    %237 = memref.load %arg3[%c3_110, %c2_111] : memref<8x4xf32, #tpu.memory_space<smem>>
    %238 = vector.broadcast %237 : f32 to vector<2x256xf32>
    %239 = arith.mulf %224, %238 : vector<2x256xf32>
    %240 = arith.addf %164, %239 : vector<2x256xf32>
    %c4_112 = arith.constant 4 : index
    %c2_113 = arith.constant 2 : index
    %241 = memref.load %arg3[%c4_112, %c2_113] : memref<8x4xf32, #tpu.memory_space<smem>>
    %242 = vector.broadcast %241 : f32 to vector<2x256xf32>
    %243 = arith.mulf %224, %242 : vector<2x256xf32>
    %244 = arith.addf %168, %243 : vector<2x256xf32>
    %c5_114 = arith.constant 5 : index
    %c2_115 = arith.constant 2 : index
    %245 = memref.load %arg3[%c5_114, %c2_115] : memref<8x4xf32, #tpu.memory_space<smem>>
    %246 = vector.broadcast %245 : f32 to vector<2x256xf32>
    %247 = arith.mulf %224, %246 : vector<2x256xf32>
    %248 = arith.addf %172, %247 : vector<2x256xf32>
    %c6_116 = arith.constant 6 : index
    %c2_117 = arith.constant 2 : index
    %249 = memref.load %arg3[%c6_116, %c2_117] : memref<8x4xf32, #tpu.memory_space<smem>>
    %250 = vector.broadcast %249 : f32 to vector<2x256xf32>
    %251 = arith.mulf %224, %250 : vector<2x256xf32>
    %252 = arith.addf %176, %251 : vector<2x256xf32>
    %c7_118 = arith.constant 7 : index
    %c2_119 = arith.constant 2 : index
    %253 = memref.load %arg3[%c7_118, %c2_119] : memref<8x4xf32, #tpu.memory_space<smem>>
    %254 = vector.broadcast %253 : f32 to vector<2x256xf32>
    %255 = arith.mulf %224, %254 : vector<2x256xf32>
    %256 = arith.addf %180, %255 : vector<2x256xf32>
    %c0_120 = arith.constant 0 : index
    %c768 = arith.constant 768 : index
    %257 = vector.load %arg1[%c0_120, %c768] : memref<2x1024xf32, #tpu.memory_space<vmem>>, vector<2x256xf32>
    %c1_i32_121 = arith.constant 1 : i32
    %258 = tpu.dynamic_rotate %257 by %c1_i32_121 dim 1 : vector<2x256xf32>, i32 -> vector<2x256xf32>
    %259 = arith.mulf %258, %21 : vector<2x256xf32>
    %c255_i32_122 = arith.constant 255 : i32
    %260 = tpu.dynamic_rotate %257 by %c255_i32_122 dim 1 : vector<2x256xf32>, i32 -> vector<2x256xf32>
    %261 = arith.mulf %260, %26 : vector<2x256xf32>
    %c3_123 = arith.constant 3 : index
    %c0_124 = arith.constant 0 : index
    %262 = memref.load %arg2[%c3_123, %c0_124] : memref<4x9xf32, #tpu.memory_space<smem>>
    %263 = vector.broadcast %262 : f32 to vector<2x256xf32>
    %264 = arith.mulf %259, %263 : vector<2x256xf32>
    %c3_125 = arith.constant 3 : index
    %c1_126 = arith.constant 1 : index
    %265 = memref.load %arg2[%c3_125, %c1_126] : memref<4x9xf32, #tpu.memory_space<smem>>
    %266 = vector.broadcast %265 : f32 to vector<2x256xf32>
    %267 = arith.mulf %257, %266 : vector<2x256xf32>
    %268 = arith.addf %264, %267 : vector<2x256xf32>
    %c3_127 = arith.constant 3 : index
    %c2_128 = arith.constant 2 : index
    %269 = memref.load %arg2[%c3_127, %c2_128] : memref<4x9xf32, #tpu.memory_space<smem>>
    %270 = vector.broadcast %269 : f32 to vector<2x256xf32>
    %271 = arith.mulf %261, %270 : vector<2x256xf32>
    %272 = arith.addf %268, %271 : vector<2x256xf32>
    %c3_129 = arith.constant 3 : index
    %c3_130 = arith.constant 3 : index
    %273 = memref.load %arg2[%c3_129, %c3_130] : memref<4x9xf32, #tpu.memory_space<smem>>
    %274 = vector.broadcast %273 : f32 to vector<2x256xf32>
    %275 = arith.mulf %259, %274 : vector<2x256xf32>
    %c3_131 = arith.constant 3 : index
    %c4_132 = arith.constant 4 : index
    %276 = memref.load %arg2[%c3_131, %c4_132] : memref<4x9xf32, #tpu.memory_space<smem>>
    %277 = vector.broadcast %276 : f32 to vector<2x256xf32>
    %278 = arith.mulf %257, %277 : vector<2x256xf32>
    %279 = arith.addf %275, %278 : vector<2x256xf32>
    %c3_133 = arith.constant 3 : index
    %c5_134 = arith.constant 5 : index
    %280 = memref.load %arg2[%c3_133, %c5_134] : memref<4x9xf32, #tpu.memory_space<smem>>
    %281 = vector.broadcast %280 : f32 to vector<2x256xf32>
    %282 = arith.mulf %261, %281 : vector<2x256xf32>
    %283 = arith.addf %279, %282 : vector<2x256xf32>
    %c3_135 = arith.constant 3 : index
    %c6_136 = arith.constant 6 : index
    %284 = memref.load %arg2[%c3_135, %c6_136] : memref<4x9xf32, #tpu.memory_space<smem>>
    %285 = vector.broadcast %284 : f32 to vector<2x256xf32>
    %286 = arith.mulf %259, %285 : vector<2x256xf32>
    %c3_137 = arith.constant 3 : index
    %c7_138 = arith.constant 7 : index
    %287 = memref.load %arg2[%c3_137, %c7_138] : memref<4x9xf32, #tpu.memory_space<smem>>
    %288 = vector.broadcast %287 : f32 to vector<2x256xf32>
    %289 = arith.mulf %257, %288 : vector<2x256xf32>
    %290 = arith.addf %286, %289 : vector<2x256xf32>
    %c3_139 = arith.constant 3 : index
    %c8_140 = arith.constant 8 : index
    %291 = memref.load %arg2[%c3_139, %c8_140] : memref<4x9xf32, #tpu.memory_space<smem>>
    %292 = vector.broadcast %291 : f32 to vector<2x256xf32>
    %293 = arith.mulf %261, %292 : vector<2x256xf32>
    %294 = arith.addf %290, %293 : vector<2x256xf32>
    %c16_i32_141 = arith.constant 16 : i32
    %295 = tpu.dynamic_rotate %272 by %c16_i32_141 dim 1 : vector<2x256xf32>, i32 -> vector<2x256xf32>
    %296 = arith.mulf %31, %295 : vector<2x256xf32>
    %297 = arith.addf %283, %296 : vector<2x256xf32>
    %c240_i32_142 = arith.constant 240 : i32
    %298 = tpu.dynamic_rotate %294 by %c240_i32_142 dim 1 : vector<2x256xf32>, i32 -> vector<2x256xf32>
    %299 = arith.mulf %36, %298 : vector<2x256xf32>
    %300 = arith.addf %297, %299 : vector<2x256xf32>
    %c0_143 = arith.constant 0 : index
    %c3_144 = arith.constant 3 : index
    %301 = memref.load %arg3[%c0_143, %c3_144] : memref<8x4xf32, #tpu.memory_space<smem>>
    %302 = vector.broadcast %301 : f32 to vector<2x256xf32>
    %303 = arith.mulf %300, %302 : vector<2x256xf32>
    %304 = arith.addf %228, %303 : vector<2x256xf32>
    %c1_145 = arith.constant 1 : index
    %c3_146 = arith.constant 3 : index
    %305 = memref.load %arg3[%c1_145, %c3_146] : memref<8x4xf32, #tpu.memory_space<smem>>
    %306 = vector.broadcast %305 : f32 to vector<2x256xf32>
    %307 = arith.mulf %300, %306 : vector<2x256xf32>
    %308 = arith.addf %232, %307 : vector<2x256xf32>
    %c2_147 = arith.constant 2 : index
    %c3_148 = arith.constant 3 : index
    %309 = memref.load %arg3[%c2_147, %c3_148] : memref<8x4xf32, #tpu.memory_space<smem>>
    %310 = vector.broadcast %309 : f32 to vector<2x256xf32>
    %311 = arith.mulf %300, %310 : vector<2x256xf32>
    %312 = arith.addf %236, %311 : vector<2x256xf32>
    %c3_149 = arith.constant 3 : index
    %c3_150 = arith.constant 3 : index
    %313 = memref.load %arg3[%c3_149, %c3_150] : memref<8x4xf32, #tpu.memory_space<smem>>
    %314 = vector.broadcast %313 : f32 to vector<2x256xf32>
    %315 = arith.mulf %300, %314 : vector<2x256xf32>
    %316 = arith.addf %240, %315 : vector<2x256xf32>
    %c4_151 = arith.constant 4 : index
    %c3_152 = arith.constant 3 : index
    %317 = memref.load %arg3[%c4_151, %c3_152] : memref<8x4xf32, #tpu.memory_space<smem>>
    %318 = vector.broadcast %317 : f32 to vector<2x256xf32>
    %319 = arith.mulf %300, %318 : vector<2x256xf32>
    %320 = arith.addf %244, %319 : vector<2x256xf32>
    %c5_153 = arith.constant 5 : index
    %c3_154 = arith.constant 3 : index
    %321 = memref.load %arg3[%c5_153, %c3_154] : memref<8x4xf32, #tpu.memory_space<smem>>
    %322 = vector.broadcast %321 : f32 to vector<2x256xf32>
    %323 = arith.mulf %300, %322 : vector<2x256xf32>
    %324 = arith.addf %248, %323 : vector<2x256xf32>
    %c6_155 = arith.constant 6 : index
    %c3_156 = arith.constant 3 : index
    %325 = memref.load %arg3[%c6_155, %c3_156] : memref<8x4xf32, #tpu.memory_space<smem>>
    %326 = vector.broadcast %325 : f32 to vector<2x256xf32>
    %327 = arith.mulf %300, %326 : vector<2x256xf32>
    %328 = arith.addf %252, %327 : vector<2x256xf32>
    %c7_157 = arith.constant 7 : index
    %c3_158 = arith.constant 3 : index
    %329 = memref.load %arg3[%c7_157, %c3_158] : memref<8x4xf32, #tpu.memory_space<smem>>
    %330 = vector.broadcast %329 : f32 to vector<2x256xf32>
    %331 = arith.mulf %300, %330 : vector<2x256xf32>
    %332 = arith.addf %256, %331 : vector<2x256xf32>
    %c0_159 = arith.constant 0 : index
    %333 = memref.load %arg4[%c0_159] : memref<8xf32, #tpu.memory_space<smem>>
    %334 = vector.broadcast %333 : f32 to vector<2x256xf32>
    %335 = arith.addf %304, %334 : vector<2x256xf32>
    %c0_160 = arith.constant 0 : index
    %c0_161 = arith.constant 0 : index
    %336 = vector.load %arg5[%c0_160, %c0_161] : memref<2x2048xf32, #tpu.memory_space<vmem>>, vector<2x256xf32>
    tpu.vector_store %arg5[%c0_160, %c0_161], %335 {strides = array<i32>} : memref<2x2048xf32, #tpu.memory_space<vmem>>, vector<2x256xf32>,
    %c1_162 = arith.constant 1 : index
    %337 = memref.load %arg4[%c1_162] : memref<8xf32, #tpu.memory_space<smem>>
    %338 = vector.broadcast %337 : f32 to vector<2x256xf32>
    %339 = arith.addf %308, %338 : vector<2x256xf32>
    %c0_163 = arith.constant 0 : index
    %c256_164 = arith.constant 256 : index
    %340 = vector.load %arg5[%c0_163, %c256_164] : memref<2x2048xf32, #tpu.memory_space<vmem>>, vector<2x256xf32>
    tpu.vector_store %arg5[%c0_163, %c256_164], %339 {strides = array<i32>} : memref<2x2048xf32, #tpu.memory_space<vmem>>, vector<2x256xf32>,
    %c2_165 = arith.constant 2 : index
    %341 = memref.load %arg4[%c2_165] : memref<8xf32, #tpu.memory_space<smem>>
    %342 = vector.broadcast %341 : f32 to vector<2x256xf32>
    %343 = arith.addf %312, %342 : vector<2x256xf32>
    %c0_166 = arith.constant 0 : index
    %c512_167 = arith.constant 512 : index
    %344 = vector.load %arg5[%c0_166, %c512_167] : memref<2x2048xf32, #tpu.memory_space<vmem>>, vector<2x256xf32>
    tpu.vector_store %arg5[%c0_166, %c512_167], %343 {strides = array<i32>} : memref<2x2048xf32, #tpu.memory_space<vmem>>, vector<2x256xf32>,
    %c3_168 = arith.constant 3 : index
    %345 = memref.load %arg4[%c3_168] : memref<8xf32, #tpu.memory_space<smem>>
    %346 = vector.broadcast %345 : f32 to vector<2x256xf32>
    %347 = arith.addf %316, %346 : vector<2x256xf32>
    %c0_169 = arith.constant 0 : index
    %c768_170 = arith.constant 768 : index
    %348 = vector.load %arg5[%c0_169, %c768_170] : memref<2x2048xf32, #tpu.memory_space<vmem>>, vector<2x256xf32>
    tpu.vector_store %arg5[%c0_169, %c768_170], %347 {strides = array<i32>} : memref<2x2048xf32, #tpu.memory_space<vmem>>, vector<2x256xf32>,
    %c4_171 = arith.constant 4 : index
    %349 = memref.load %arg4[%c4_171] : memref<8xf32, #tpu.memory_space<smem>>
    %350 = vector.broadcast %349 : f32 to vector<2x256xf32>
    %351 = arith.addf %320, %350 : vector<2x256xf32>
    %c0_172 = arith.constant 0 : index
    %c1024 = arith.constant 1024 : index
    %352 = vector.load %arg5[%c0_172, %c1024] : memref<2x2048xf32, #tpu.memory_space<vmem>>, vector<2x256xf32>
    tpu.vector_store %arg5[%c0_172, %c1024], %351 {strides = array<i32>} : memref<2x2048xf32, #tpu.memory_space<vmem>>, vector<2x256xf32>,
    %c5_173 = arith.constant 5 : index
    %353 = memref.load %arg4[%c5_173] : memref<8xf32, #tpu.memory_space<smem>>
    %354 = vector.broadcast %353 : f32 to vector<2x256xf32>
    %355 = arith.addf %324, %354 : vector<2x256xf32>
    %c0_174 = arith.constant 0 : index
    %c1280 = arith.constant 1280 : index
    %356 = vector.load %arg5[%c0_174, %c1280] : memref<2x2048xf32, #tpu.memory_space<vmem>>, vector<2x256xf32>
    tpu.vector_store %arg5[%c0_174, %c1280], %355 {strides = array<i32>} : memref<2x2048xf32, #tpu.memory_space<vmem>>, vector<2x256xf32>,
    %c6_175 = arith.constant 6 : index
    %357 = memref.load %arg4[%c6_175] : memref<8xf32, #tpu.memory_space<smem>>
    %358 = vector.broadcast %357 : f32 to vector<2x256xf32>
    %359 = arith.addf %328, %358 : vector<2x256xf32>
    %c0_176 = arith.constant 0 : index
    %c1536 = arith.constant 1536 : index
    %360 = vector.load %arg5[%c0_176, %c1536] : memref<2x2048xf32, #tpu.memory_space<vmem>>, vector<2x256xf32>
    tpu.vector_store %arg5[%c0_176, %c1536], %359 {strides = array<i32>} : memref<2x2048xf32, #tpu.memory_space<vmem>>, vector<2x256xf32>,
    %c7_177 = arith.constant 7 : index
    %361 = memref.load %arg4[%c7_177] : memref<8xf32, #tpu.memory_space<smem>>
    %362 = vector.broadcast %361 : f32 to vector<2x256xf32>
    %363 = arith.addf %332, %362 : vector<2x256xf32>
    %c0_178 = arith.constant 0 : index
    %c1792 = arith.constant 1792 : index
    %364 = vector.load %arg5[%c0_178, %c1792] : memref<2x2048xf32, #tpu.memory_space<vmem>>, vector<2x256xf32>
    tpu.vector_store %arg5[%c0_178, %c1792], %363 {strides = array<i32>} : memref<2x2048xf32, #tpu.memory_space<vmem>>, vector<2x256xf32>,
    return
  }
  func.func @transform_0(%arg0: i32) -> (i32, i32) {
    %c0_i32 = arith.constant 0 : i32
    %c0_i32_0 = arith.constant 0 : i32
    return %arg0, %c0_i32 : i32, i32
  }
  func.func @transform_1(%arg0: i32) -> (i32, i32) {
    %c0_i32 = arith.constant 0 : i32
    %c0_i32_0 = arith.constant 0 : i32
    %c0_i32_1 = arith.constant 0 : i32
    return %c0_i32, %c0_i32_0 : i32, i32
  }
  func.func @transform_2(%arg0: i32) -> (i32, i32) {
    %c0_i32 = arith.constant 0 : i32
    %c0_i32_0 = arith.constant 0 : i32
    %c0_i32_1 = arith.constant 0 : i32
    return %c0_i32, %c0_i32_0 : i32, i32
  }
  func.func @transform_3(%arg0: i32) -> i32 {
    %c0_i32 = arith.constant 0 : i32
    %c0_i32_0 = arith.constant 0 : i32
    return %c0_i32 : i32
  }
  func.func @transform_4(%arg0: i32) -> (i32, i32) {
    %c0_i32 = arith.constant 0 : i32
    %c0_i32_0 = arith.constant 0 : i32
    return %arg0, %c0_i32 : i32, i32
  }
}

</mosaic_0001>

<llo_original>
// kernel: tpu_custom_call.1
$region0: #{tpu_custom_call.1}
  #allocation0 [shape = 'u32[]', space=smem, size = 0x4, offset = 0x4, fixed_abs, tag = 'smem constant byte address 0x4 - core index']
  #allocation1 [shape = 'u32[72,128]{1,0:T(1,128)}', space=vmem, size = 0x9000, scoped, tag = 'internal scratch']
  %s0 = inlined_call_operand.hbm [shape: f32[2,1024], index: 0, kind: input, shape index: {}]
  %s1 = inlined_call_operand.vmem [shape: f32[4,9], index: 1, kind: input, shape index: {}]
  %s2 = inlined_call_operand.vmem [shape: f32[8,4], index: 2, kind: input, shape index: {}]
  %s3 = inlined_call_operand.vmem [shape: f32[8], index: 3, kind: input, shape index: {}]
  %s4 = inlined_call_operand.hbm [shape: f32[2,2048], index: 4, kind: output, shape index: {}]
  %s5 = sld [smem:[#allocation0]]
  $region42: #{tpu_custom_call.1} parent=0
    _
  %s7 = ssub.s32 1, %s5
  %s8 = scalar_select 0, %s7, %s5
  $region1: #{tpu_custom_call.1} parent=0
    #allocation2 [shape = 'u8[8192]{0}', space=vmem, size = 0x2000, scoped, tag = 'input window, operand 0, single buffered']
    #allocation3 [shape = 's32[1]{0}', space=sflag, size = 0x4, scoped, tag = 'scoped memory for tpu_custom_call.1']
    #allocation4 [shape = 's32[1]{0}', space=sflag, size = 0x4, scoped, tag = 'scoped memory for tpu_custom_call.1']
    #allocation5 [shape = 's32[1]{0}', space=sflag, size = 0x4, scoped, tag = 'scoped memory for tpu_custom_call.1']
    #allocation6 [shape = 'u8[2048]{0}', space=smem, size = 0x800, scoped, tag = 'input window, operand 1, single buffered']
    #allocation7 [shape = 'u8[4096]{0}', space=smem, size = 0x1000, scoped, tag = 'input window, operand 2, single buffered']
    #allocation8 [shape = 's32[1]{0}', space=sflag, size = 0x4, scoped, tag = 'scoped memory for tpu_custom_call.1']
    #allocation9 [shape = 'u8[512]{0}', space=smem, size = 0x200, scoped, tag = 'input window, operand 3, single buffered']
    #allocation10 [shape = 'u8[16384]{0}', space=vmem, size = 0x4000, scoped, tag = 'output window, operand 0, single buffered']
    %9 = vsyncpa [#allocation3], 0
    %10 = vsyncpa [#allocation5], 0
    %11 = vsyncpa [#allocation8], 0
    %12 = vsyncpa [#allocation4], 0
    // Predicated region
    $region2: #{tpu_custom_call.1} parent=1 // pred_check
      _
    $region3: #{tpu_custom_call.1} parent=1 // pred_check_branch
      %14 = sbr.rel (0) target = $region5
    $region4: #{tpu_custom_call.1} parent=1 // pred_region
      %16 = vsyncadd [#allocation3], 0
      %s18 = sshll.u32 %s0, 4
      %s19 = int_to_ptr.hbm [resolvable:$true] %s18
      %s20 = sshll.u32 [#allocation2], 4
      %s21 = int_to_ptr.vmem [resolvable:$true] %s20
      %23 = dma.hbm_to_vmem [thread:$0]  %s19, 256, %s21, [#allocation3]
    $region5: #{tpu_custom_call.1} parent=1 // pred_fallthru
      _
    // Predicated region
    $region6: #{tpu_custom_call.1} parent=1 // pred_check
      _
    $region7: #{tpu_custom_call.1} parent=1 // pred_check_branch
      %25 = sbr.rel (0) target = $region9
    $region8: #{tpu_custom_call.1} parent=1 // pred_region
      %27 = vsyncadd [#allocation5], 0
      %s29 = sshll.u32 %s1, 4
      %s30 = int_to_ptr.vmem [resolvable:$true] %s29
      %32 = dma.vmem_to_smem %s30, 64, [#allocation6], [#allocation5]
    $region9: #{tpu_custom_call.1} parent=1 // pred_fallthru
      _
    // Predicated region
    $region10: #{tpu_custom_call.1} parent=1 // pred_check
      _
    $region11: #{tpu_custom_call.1} parent=1 // pred_check_branch
      %34 = sbr.rel (0) target = $region13
    $region12: #{tpu_custom_call.1} parent=1 // pred_region
      %36 = vsyncadd [#allocation8], 0
      %s38 = sshll.u32 %s2, 4
      %s39 = int_to_ptr.vmem [resolvable:$true] %s38
      %41 = dma.vmem_to_smem %s39, 128, [#allocation7], [#allocation8]
    $region13: #{tpu_custom_call.1} parent=1 // pred_fallthru
      _
    // Predicated region
    $region14: #{tpu_custom_call.1} parent=1 // pred_check
      _
    $region15: #{tpu_custom_call.1} parent=1 // pred_check_branch
      %43 = sbr.rel (0) target = $region17
    $region16: #{tpu_custom_call.1} parent=1 // pred_region
      %45 = vsyncadd [#allocation8], 0
      %s47 = sshll.u32 %s3, 4
      %s48 = int_to_ptr.vmem [resolvable:$true] %s47
      %50 = dma.vmem_to_smem %s48, 16, [#allocation9], [#allocation8]
    $region17: #{tpu_custom_call.1} parent=1 // pred_fallthru
      _
    // Predicated region
    $region18: #{tpu_custom_call.1} parent=1 // pred_check
      _
    $region19: #{tpu_custom_call.1} parent=1 // pred_check_branch
      %52 = sbr.rel (0) target = $region21
    $region20: #{tpu_custom_call.1} parent=1 // pred_region
      %54 = dma.done [#allocation3], 256
    $region21: #{tpu_custom_call.1} parent=1 // pred_fallthru
      _
    // Predicated region
    $region22: #{tpu_custom_call.1} parent=1 // pred_check
      _
    $region23: #{tpu_custom_call.1} parent=1 // pred_check_branch
      %56 = sbr.rel (0) target = $region25
    $region24: #{tpu_custom_call.1} parent=1 // pred_region
      %58 = dma.done [#allocation5], 64
    $region25: #{tpu_custom_call.1} parent=1 // pred_fallthru
      _
    // Predicated region
    $region26: #{tpu_custom_call.1} parent=1 // pred_check
      _
    $region27: #{tpu_custom_call.1} parent=1 // pred_check_branch
      %60 = sbr.rel (0) target = $region29
    $region28: #{tpu_custom_call.1} parent=1 // pred_region
      %62 = dma.done [#allocation8], 128
    $region29: #{tpu_custom_call.1} parent=1 // pred_fallthru
      _
    // Predicated region
    $region30: #{tpu_custom_call.1} parent=1 // pred_check
      _
    $region31: #{tpu_custom_call.1} parent=1 // pred_check_branch
      %64 = sbr.rel (0) target = $region33
    $region32: #{tpu_custom_call.1} parent=1 // pred_region
      %66 = dma.done [#allocation8], 16
    $region33: #{tpu_custom_call.1} parent=1 // pred_fallthru
      _
    %67 = sfence
    %v68 = vlaneseq
    %v69 = vand.u32 %v68, 127
    %v70 = vadd.s32 %v69, 128
    %vm71 = vcmp.lt.s32.totalorder %v69, 0
    %v72 = vsub.s32 0, %v69
    %v73 = vsel %vm71, %v72, %v69
    %v74 = vshrl.u32 %v73, 4
    %v75 = vand.u32 %v73, 15
    %v76 = vsub.s32 0, %v75
    %v77 = vsel %vm71, %v76, %v75
    %vm78 = vcmp.lt.s32.totalorder %v70, 0
    %v79 = vsub.s32 0, %v70
    %v80 = vsel %vm78, %v79, %v70
    %v81 = vshrl.u32 %v80, 4
    %v82 = vand.u32 %v80, 15
    %v83 = vsub.s32 0, %v82
    %v84 = vsel %vm78, %v83, %v82
    %vm85 = vcmp.ne.s32.totalorder %v77, 0
    %vm86 = vcmp.ne.s32.totalorder %v84, 0
    %vm87 = vcmp.lt.s32.totalorder %v77, 0
    %vm88 = vcmp.lt.s32.totalorder %v84, 0
    %vm89 = vmand %vm87, %vm85
    %vm90 = vmand %vm88, %vm86
    %v91 = vadd.s32 %v77, 16
    %v92 = vadd.s32 %v84, 16
    %v93 = vsel %vm89, %v91, %v77
    %v94 = vsel %vm90, %v92, %v84
    %vm95 = vcmp.gt.s32.totalorder %v93, 0
    %vm96 = vcmp.gt.s32.totalorder %v94, 0
    %v97 = vsel %vm95, 1.0, 0.0
    %v98 = vsel %vm96, 1.0, 0.0
    %vm99 = vcmp.lt.s32.totalorder %v93, 15
    %vm100 = vcmp.lt.s32.totalorder %v94, 15
    %v101 = vsel %vm99, 1.0, 0.0
    %v102 = vsel %vm100, 1.0, 0.0
    %vm103 = vcmp.ge.s32.totalorder %v69, 16
    %vm104 = vcmp.ge.s32.totalorder %v70, 16
    %v105 = vsel %vm103, 1.0, 0.0
    %v106 = vsel %vm104, 1.0, 0.0
    %vm107 = vcmp.lt.s32.totalorder %v69, 240
    %vm108 = vcmp.lt.s32.totalorder %v70, 240
    %v109 = vsel %vm107, 1.0, 0.0
    %v110 = vsel %vm108, 1.0, 0.0
    %v111 = vld [vmem:[#allocation2] sm:$0xf]
    %113 = vst [vmem:[#allocation1] ss:$4 sm:$0xff] %v111
    %v114 = vld.sshfl [vmem:[#allocation1] sm:$0xff pattern:$0x73625140]
    %v115 = vld.sshfl [vmem:[#allocation1 + $0x8] sm:$0xff pattern:$0x73625140]
    %118 = vrot.lane.b32.xlu0 %v114, 1
    %v119 = vpop.permute.xlu0 %118
    %120 = vrot.lane.b32.xlu0 %v115, 1
    %v121 = vpop.permute.xlu0 %120
    %vm122 = vcmp.lt.s32.totalorder %v69, 1
    %v123 = vsel %vm122, %v119, %v121
    %v124 = vsel %vm122, %v121, %v119
    %v125 = vmul.f32 %v124, %v97
    %v126 = vmul.f32 %v123, %v98
    %127 = vst [vmem:[#allocation1] ss:$4 sm:$0xff] %v111
    %v128 = vld.sshfl [vmem:[#allocation1] sm:$0xff pattern:$0x73625140]
    %v129 = vld.sshfl [vmem:[#allocation1 + $0x8] sm:$0xff pattern:$0x73625140]
    %132 = vrot.lane.b32.xlu0 %v128, 127
    %v133 = vpop.permute.xlu0 %132
    %134 = vrot.lane.b32.xlu0 %v129, 127
    %v135 = vpop.permute.xlu0 %134
    %vm136 = vcmp.lt.s32.totalorder %v69, 127
    %v137 = vsel %vm136, %v133, %v135
    %v138 = vsel %vm136, %v135, %v133
    %v139 = vmul.f32 %v137, %v101
    %v140 = vmul.f32 %v138, %v102
    %s141 = sld [smem:[#allocation6]]
    %v142 = vstv %s141
    %v143 = vmul.f32 %v125, %v142
    %v144 = vmul.f32 %v126, %v142
    %s145 = sld [smem:[#allocation6 + $0x1]]
    %v146 = vstv %s145
    %v147 = vmul.f32 %v111, %v146
    %149 = vst [vmem:[#allocation1] ss:$4 sm:$0xff] %v147
    %v150 = vld.sshfl [vmem:[#allocation1] sm:$0xff pattern:$0x73625140]
    %v151 = vld.sshfl [vmem:[#allocation1 + $0x8] sm:$0xff pattern:$0x73625140]
    %v154 = vadd.f32 %v143, %v150
    %v155 = vadd.f32 %v144, %v151
    %s156 = sld [smem:[#allocation6 + $0x2]]
    %v157 = vstv %s156
    %v158 = vmul.f32 %v139, %v157
    %v159 = vmul.f32 %v140, %v157
    %v160 = vadd.f32 %v154, %v158
    %v161 = vadd.f32 %v155, %v159
    %s162 = sld [smem:[#allocation6 + $0x3]]
    %v163 = vstv %s162
    %v164 = vmul.f32 %v125, %v163
    %v165 = vmul.f32 %v126, %v163
    %s166 = sld [smem:[#allocation6 + $0x4]]
    %v167 = vstv %s166
    %v168 = vmul.f32 %v111, %v167
    %170 = vst [vmem:[#allocation1] ss:$4 sm:$0xff] %v168
    %v171 = vld.sshfl [vmem:[#allocation1] sm:$0xff pattern:$0x73625140]
    %v172 = vld.sshfl [vmem:[#allocation1 + $0x8] sm:$0xff pattern:$0x73625140]
    %v175 = vadd.f32 %v164, %v171
    %v176 = vadd.f32 %v165, %v172
    %s177 = sld [smem:[#allocation6 + $0x5]]
    %v178 = vstv %s177
    %v179 = vmul.f32 %v139, %v178
    %v180 = vmul.f32 %v140, %v178
    %v181 = vadd.f32 %v175, %v179
    %v182 = vadd.f32 %v176, %v180
    %s183 = sld [smem:[#allocation6 + $0x6]]
    %v184 = vstv %s183
    %v185 = vmul.f32 %v125, %v184
    %v186 = vmul.f32 %v126, %v184
    %s187 = sld [smem:[#allocation6 + $0x7]]
    %v188 = vstv %s187
    %v189 = vmul.f32 %v111, %v188
    %191 = vst [vmem:[#allocation1] ss:$4 sm:$0xff] %v189
    %v192 = vld.sshfl [vmem:[#allocation1] sm:$0xff pattern:$0x73625140]
    %v193 = vld.sshfl [vmem:[#allocation1 + $0x8] sm:$0xff pattern:$0x73625140]
    %v196 = vadd.f32 %v185, %v192
    %v197 = vadd.f32 %v186, %v193
    %s198 = sld [smem:[#allocation6 + $0x8]]
    %v199 = vstv %s198
    %v200 = vmul.f32 %v139, %v199
    %v201 = vmul.f32 %v140, %v199
    %v202 = vadd.f32 %v196, %v200
    %v203 = vadd.f32 %v197, %v201
    %204 = vrot.lane.b32.xlu0 %v160, 16
    %v205 = vpop.permute.xlu0 %204
    %206 = vrot.lane.b32.xlu0 %v161, 16
    %v207 = vpop.permute.xlu0 %206
    %vm208 = vcmp.lt.s32.totalorder %v69, 16
    %v209 = vsel %vm208, %v205, %v207
    %v210 = vsel %vm208, %v207, %v205
    %v211 = vmul.f32 %v105, %v210
    %v212 = vmul.f32 %v106, %v209
    %v213 = vadd.f32 %v181, %v211
    %v214 = vadd.f32 %v182, %v212
    %215 = vrot.lane.b32.xlu0 %v202, 112
    %v216 = vpop.permute.xlu0 %215
    %217 = vrot.lane.b32.xlu0 %v203, 112
    %v218 = vpop.permute.xlu0 %217
    %vm219 = vcmp.lt.s32.totalorder %v69, 112
    %v220 = vsel %vm219, %v216, %v218
    %v221 = vsel %vm219, %v218, %v216
    %v222 = vmul.f32 %v109, %v220
    %v223 = vmul.f32 %v110, %v221
    %v224 = vadd.f32 %v213, %v222
    %v225 = vadd.f32 %v214, %v223
    %s226 = sld [smem:[#allocation7]]
    %v227 = vstv %s226
    %v228 = vmul.f32 %v224, %v227
    %v229 = vmul.f32 %v225, %v227
    %s230 = sld [smem:[#allocation7 + $0x80]]
    %v231 = vstv %s230
    %v232 = vmul.f32 %v224, %v231
    %v233 = vmul.f32 %v225, %v231
    %s234 = sld [smem:[#allocation7 + $0x100]]
    %v235 = vstv %s234
    %v236 = vmul.f32 %v224, %v235
    %v237 = vmul.f32 %v225, %v235
    %s238 = sld [smem:[#allocation7 + $0x180]]
    %v239 = vstv %s238
    %v240 = vmul.f32 %v224, %v239
    %v241 = vmul.f32 %v225, %v239
    %s242 = sld [smem:[#allocation7 + $0x200]]
    %v243 = vstv %s242
    %v244 = vmul.f32 %v224, %v243
    %v245 = vmul.f32 %v225, %v243
    %s246 = sld [smem:[#allocation7 + $0x280]]
    %v247 = vstv %s246
    %v248 = vmul.f32 %v224, %v247
    %v249 = vmul.f32 %v225, %v247
    %s250 = sld [smem:[#allocation7 + $0x300]]
    %v251 = vstv %s250
    %v252 = vmul.f32 %v224, %v251
    %v253 = vmul.f32 %v225, %v251
    %s254 = sld [smem:[#allocation7 + $0x380]]
    %v255 = vstv %s254
    %v256 = vmul.f32 %v224, %v255
    %v257 = vmul.f32 %v225, %v255
    %v258 = vld [vmem:[#allocation2 + $0x4] sm:$0xf]
    %260 = vst [vmem:[#allocation1] ss:$4 sm:$0xff] %v258
    %v261 = vld.sshfl [vmem:[#allocation1] sm:$0xff pattern:$0x73625140]
    %v262 = vld.sshfl [vmem:[#allocation1 + $0x8] sm:$0xff pattern:$0x73625140]
    %265 = vrot.lane.b32.xlu0 %v261, 1
    %v266 = vpop.permute.xlu0 %265
    %267 = vrot.lane.b32.xlu0 %v262, 1
    %v268 = vpop.permute.xlu0 %267
    %v269 = vsel %vm122, %v266, %v268
    %v270 = vsel %vm122, %v268, %v266
    %v271 = vmul.f32 %v270, %v97
    %v272 = vmul.f32 %v269, %v98
    %273 = vst [vmem:[#allocation1] ss:$4 sm:$0xff] %v258
    %v274 = vld.sshfl [vmem:[#allocation1] sm:$0xff pattern:$0x73625140]
    %v275 = vld.sshfl [vmem:[#allocation1 + $0x8] sm:$0xff pattern:$0x73625140]
    %278 = vrot.lane.b32.xlu0 %v274, 127
    %v279 = vpop.permute.xlu0 %278
    %280 = vrot.lane.b32.xlu0 %v275, 127
    %v281 = vpop.permute.xlu0 %280
    %v282 = vsel %vm136, %v279, %v281
    %v283 = vsel %vm136, %v281, %v279
    %v284 = vmul.f32 %v282, %v101
    %v285 = vmul.f32 %v283, %v102
    %s286 = sld [smem:[#allocation6 + $0x80]]
    %v287 = vstv %s286
    %v288 = vmul.f32 %v271, %v287
    %v289 = vmul.f32 %v272, %v287
    %s290 = sld [smem:[#allocation6 + $0x81]]
    %v291 = vstv %s290
    %v292 = vmul.f32 %v258, %v291
    %294 = vst [vmem:[#allocation1] ss:$4 sm:$0xff] %v292
    %v295 = vld.sshfl [vmem:[#allocation1] sm:$0xff pattern:$0x73625140]
    %v296 = vld.sshfl [vmem:[#allocation1 + $0x8] sm:$0xff pattern:$0x73625140]
    %v299 = vadd.f32 %v288, %v295
    %v300 = vadd.f32 %v289, %v296
    %s301 = sld [smem:[#allocation6 + $0x82]]
    %v302 = vstv %s301
    %v303 = vmul.f32 %v284, %v302
    %v304 = vmul.f32 %v285, %v302
    %v305 = vadd.f32 %v299, %v303
    %v306 = vadd.f32 %v300, %v304
    %s307 = sld [smem:[#allocation6 + $0x83]]
    %v308 = vstv %s307
    %v309 = vmul.f32 %v271, %v308
    %v310 = vmul.f32 %v272, %v308
    %s311 = sld [smem:[#allocation6 + $0x84]]
    %v312 = vstv %s311
    %v313 = vmul.f32 %v258, %v312
    %315 = vst [vmem:[#allocation1] ss:$4 sm:$0xff] %v313
    %v316 = vld.sshfl [vmem:[#allocation1] sm:$0xff pattern:$0x73625140]
    %v317 = vld.sshfl [vmem:[#allocation1 + $0x8] sm:$0xff pattern:$0x73625140]
    %v320 = vadd.f32 %v309, %v316
    %v321 = vadd.f32 %v310, %v317
    %s322 = sld [smem:[#allocation6 + $0x85]]
    %v323 = vstv %s322
    %v324 = vmul.f32 %v284, %v323
    %v325 = vmul.f32 %v285, %v323
    %v326 = vadd.f32 %v320, %v324
    %v327 = vadd.f32 %v321, %v325
    %s328 = sld [smem:[#allocation6 + $0x86]]
    %v329 = vstv %s328
    %v330 = vmul.f32 %v271, %v329
    %v331 = vmul.f32 %v272, %v329
    %s332 = sld [smem:[#allocation6 + $0x87]]
    %v333 = vstv %s332
    %v334 = vmul.f32 %v258, %v333
    %336 = vst [vmem:[#allocation1] ss:$4 sm:$0xff] %v334
    %v337 = vld.sshfl [vmem:[#allocation1] sm:$0xff pattern:$0x73625140]
    %v338 = vld.sshfl [vmem:[#allocation1 + $0x8] sm:$0xff pattern:$0x73625140]
    %v341 = vadd.f32 %v330, %v337
    %v342 = vadd.f32 %v331, %v338
    %s343 = sld [smem:[#allocation6 + $0x88]]
    %v344 = vstv %s343
    %v345 = vmul.f32 %v284, %v344
    %v346 = vmul.f32 %v285, %v344
    %v347 = vadd.f32 %v341, %v345
    %v348 = vadd.f32 %v342, %v346
    %349 = vrot.lane.b32.xlu0 %v305, 16
    %v350 = vpop.permute.xlu0 %349
    %351 = vrot.lane.b32.xlu0 %v306, 16
    %v352 = vpop.permute.xlu0 %351
    %v353 = vsel %vm208, %v350, %v352
    %v354 = vsel %vm208, %v352, %v350
    %v355 = vmul.f32 %v105, %v354
    %v356 = vmul.f32 %v106, %v353
    %v357 = vadd.f32 %v326, %v355
    %v358 = vadd.f32 %v327, %v356
    %359 = vrot.lane.b32.xlu0 %v347, 112
    %v360 = vpop.permute.xlu0 %359
    %361 = vrot.lane.b32.xlu0 %v348, 112
    %v362 = vpop.permute.xlu0 %361
    %v363 = vsel %vm219, %v360, %v362
    %v364 = vsel %vm219, %v362, %v360
    %v365 = vmul.f32 %v109, %v363
    %v366 = vmul.f32 %v110, %v364
    %v367 = vadd.f32 %v357, %v365
    %v368 = vadd.f32 %v358, %v366
    %s369 = sld [smem:[#allocation7 + $0x1]]
    %v370 = vstv %s369
    %v371 = vmul.f32 %v367, %v370
    %v372 = vmul.f32 %v368, %v370
    %v373 = vadd.f32 %v228, %v371
    %v374 = vadd.f32 %v229, %v372
    %s375 = sld [smem:[#allocation7 + $0x81]]
    %v376 = vstv %s375
    %v377 = vmul.f32 %v367, %v376
    %v378 = vmul.f32 %v368, %v376
    %v379 = vadd.f32 %v232, %v377
    %v380 = vadd.f32 %v233, %v378
    %s381 = sld [smem:[#allocation7 + $0x101]]
    %v382 = vstv %s381
    %v383 = vmul.f32 %v367, %v382
    %v384 = vmul.f32 %v368, %v382
    %v385 = vadd.f32 %v236, %v383
    %v386 = vadd.f32 %v237, %v384
    %s387 = sld [smem:[#allocation7 + $0x181]]
    %v388 = vstv %s387
    %v389 = vmul.f32 %v367, %v388
    %v390 = vmul.f32 %v368, %v388
    %v391 = vadd.f32 %v240, %v389
    %v392 = vadd.f32 %v241, %v390
    %s393 = sld [smem:[#allocation7 + $0x201]]
    %v394 = vstv %s393
    %v395 = vmul.f32 %v367, %v394
    %v396 = vmul.f32 %v368, %v394
    %v397 = vadd.f32 %v244, %v395
    %v398 = vadd.f32 %v245, %v396
    %s399 = sld [smem:[#allocation7 + $0x281]]
    %v400 = vstv %s399
    %v401 = vmul.f32 %v367, %v400
    %v402 = vmul.f32 %v368, %v400
    %v403 = vadd.f32 %v248, %v401
    %v404 = vadd.f32 %v249, %v402
    %s405 = sld [smem:[#allocation7 + $0x301]]
    %v406 = vstv %s405
    %v407 = vmul.f32 %v367, %v406
    %v408 = vmul.f32 %v368, %v406
    %v409 = vadd.f32 %v252, %v407
    %v410 = vadd.f32 %v253, %v408
    %s411 = sld [smem:[#allocation7 + $0x381]]
    %v412 = vstv %s411
    %v413 = vmul.f32 %v367, %v412
    %v414 = vmul.f32 %v368, %v412
    %v415 = vadd.f32 %v256, %v413
    %v416 = vadd.f32 %v257, %v414
    %v417 = vld [vmem:[#allocation2 + $0x8] sm:$0xf]
    %419 = vst [vmem:[#allocation1] ss:$4 sm:$0xff] %v417
    %v420 = vld.sshfl [vmem:[#allocation1] sm:$0xff pattern:$0x73625140]
    %v421 = vld.sshfl [vmem:[#allocation1 + $0x8] sm:$0xff pattern:$0x73625140]
    %424 = vrot.lane.b32.xlu0 %v420, 1
    %v425 = vpop.permute.xlu0 %424
    %426 = vrot.lane.b32.xlu0 %v421, 1
    %v427 = vpop.permute.xlu0 %426
    %v428 = vsel %vm122, %v425, %v427
    %v429 = vsel %vm122, %v427, %v425
    %v430 = vmul.f32 %v429, %v97
    %v431 = vmul.f32 %v428, %v98
    %432 = vst [vmem:[#allocation1] ss:$4 sm:$0xff] %v417
    %v433 = vld.sshfl [vmem:[#allocation1] sm:$0xff pattern:$0x73625140]
    %v434 = vld.sshfl [vmem:[#allocation1 + $0x8] sm:$0xff pattern:$0x73625140]
    %437 = vrot.lane.b32.xlu0 %v433, 127
    %v438 = vpop.permute.xlu0 %437
    %439 = vrot.lane.b32.xlu0 %v434, 127
    %v440 = vpop.permute.xlu0 %439
    %v441 = vsel %vm136, %v438, %v440
    %v442 = vsel %vm136, %v440, %v438
    %v443 = vmul.f32 %v441, %v101
    %v444 = vmul.f32 %v442, %v102
    %s445 = sld [smem:[#allocation6 + $0x100]]
    %v446 = vstv %s445
    %v447 = vmul.f32 %v430, %v446
    %v448 = vmul.f32 %v431, %v446
    %s449 = sld [smem:[#allocation6 + $0x101]]
    %v450 = vstv %s449
    %v451 = vmul.f32 %v417, %v450
    %453 = vst [vmem:[#allocation1] ss:$4 sm:$0xff] %v451
    %v454 = vld.sshfl [vmem:[#allocation1] sm:$0xff pattern:$0x73625140]
    %v455 = vld.sshfl [vmem:[#allocation1 + $0x8] sm:$0xff pattern:$0x73625140]
    %v458 = vadd.f32 %v447, %v454
    %v459 = vadd.f32 %v448, %v455
    %s460 = sld [smem:[#allocation6 + $0x102]]
    %v461 = vstv %s460
    %v462 = vmul.f32 %v443, %v461
    %v463 = vmul.f32 %v444, %v461
    %v464 = vadd.f32 %v458, %v462
    %v465 = vadd.f32 %v459, %v463
    %s466 = sld [smem:[#allocation6 + $0x103]]
    %v467 = vstv %s466
    %v468 = vmul.f32 %v430, %v467
    %v469 = vmul.f32 %v431, %v467
    %s470 = sld [smem:[#allocation6 + $0x104]]
    %v471 = vstv %s470
    %v472 = vmul.f32 %v417, %v471
    %474 = vst [vmem:[#allocation1] ss:$4 sm:$0xff] %v472
    %v475 = vld.sshfl [vmem:[#allocation1] sm:$0xff pattern:$0x73625140]
    %v476 = vld.sshfl [vmem:[#allocation1 + $0x8] sm:$0xff pattern:$0x73625140]
    %v479 = vadd.f32 %v468, %v475
    %v480 = vadd.f32 %v469, %v476
    %s481 = sld [smem:[#allocation6 + $0x105]]
    %v482 = vstv %s481
    %v483 = vmul.f32 %v443, %v482
    %v484 = vmul.f32 %v444, %v482
    %v485 = vadd.f32 %v479, %v483
    %v486 = vadd.f32 %v480, %v484
    %s487 = sld [smem:[#allocation6 + $0x106]]
    %v488 = vstv %s487
    %v489 = vmul.f32 %v430, %v488
    %v490 = vmul.f32 %v431, %v488
    %s491 = sld [smem:[#allocation6 + $0x107]]
    %v492 = vstv %s491
    %v493 = vmul.f32 %v417, %v492
    %495 = vst [vmem:[#allocation1] ss:$4 sm:$0xff] %v493
    %v496 = vld.sshfl [vmem:[#allocation1] sm:$0xff pattern:$0x73625140]
    %v497 = vld.sshfl [vmem:[#allocation1 + $0x8] sm:$0xff pattern:$0x73625140]
    %v500 = vadd.f32 %v489, %v496
    %v501 = vadd.f32 %v490, %v497
    %s502 = sld [smem:[#allocation6 + $0x108]]
    %v503 = vstv %s502
    %v504 = vmul.f32 %v443, %v503
    %v505 = vmul.f32 %v444, %v503
    %v506 = vadd.f32 %v500, %v504
    %v507 = vadd.f32 %v501, %v505
    %508 = vrot.lane.b32.xlu0 %v464, 16
    %v509 = vpop.permute.xlu0 %508
    %510 = vrot.lane.b32.xlu0 %v465, 16
    %v511 = vpop.permute.xlu0 %510
    %v512 = vsel %vm208, %v509, %v511
    %v513 = vsel %vm208, %v511, %v509
    %v514 = vmul.f32 %v105, %v513
    %v515 = vmul.f32 %v106, %v512
    %v516 = vadd.f32 %v485, %v514
    %v517 = vadd.f32 %v486, %v515
    %518 = vrot.lane.b32.xlu0 %v506, 112
    %v519 = vpop.permute.xlu0 %518
    %520 = vrot.lane.b32.xlu0 %v507, 112
    %v521 = vpop.permute.xlu0 %520
    %v522 = vsel %vm219, %v519, %v521
    %v523 = vsel %vm219, %v521, %v519
    %v524 = vmul.f32 %v109, %v522
    %v525 = vmul.f32 %v110, %v523
    %v526 = vadd.f32 %v516, %v524
    %v527 = vadd.f32 %v517, %v525
    %s528 = sld [smem:[#allocation7 + $0x2]]
    %v529 = vstv %s528
    %v530 = vmul.f32 %v526, %v529
    %v531 = vmul.f32 %v527, %v529
    %v532 = vadd.f32 %v373, %v530
    %v533 = vadd.f32 %v374, %v531
    %s534 = sld [smem:[#allocation7 + $0x82]]
    %v535 = vstv %s534
    %v536 = vmul.f32 %v526, %v535
    %v537 = vmul.f32 %v527, %v535
    %v538 = vadd.f32 %v379, %v536
    %v539 = vadd.f32 %v380, %v537
    %s540 = sld [smem:[#allocation7 + $0x102]]
    %v541 = vstv %s540
    %v542 = vmul.f32 %v526, %v541
    %v543 = vmul.f32 %v527, %v541
    %v544 = vadd.f32 %v385, %v542
    %v545 = vadd.f32 %v386, %v543
    %s546 = sld [smem:[#allocation7 + $0x182]]
    %v547 = vstv %s546
    %v548 = vmul.f32 %v526, %v547
    %v549 = vmul.f32 %v527, %v547
    %v550 = vadd.f32 %v391, %v548
    %v551 = vadd.f32 %v392, %v549
    %s552 = sld [smem:[#allocation7 + $0x202]]
    %v553 = vstv %s552
    %v554 = vmul.f32 %v526, %v553
    %v555 = vmul.f32 %v527, %v553
    %v556 = vadd.f32 %v397, %v554
    %v557 = vadd.f32 %v398, %v555
    %s558 = sld [smem:[#allocation7 + $0x282]]
    %v559 = vstv %s558
    %v560 = vmul.f32 %v526, %v559
    %v561 = vmul.f32 %v527, %v559
    %v562 = vadd.f32 %v403, %v560
    %v563 = vadd.f32 %v404, %v561
    %s564 = sld [smem:[#allocation7 + $0x302]]
    %v565 = vstv %s564
    %v566 = vmul.f32 %v526, %v565
    %v567 = vmul.f32 %v527, %v565
    %v568 = vadd.f32 %v409, %v566
    %v569 = vadd.f32 %v410, %v567
    %s570 = sld [smem:[#allocation7 + $0x382]]
    %v571 = vstv %s570
    %v572 = vmul.f32 %v526, %v571
    %v573 = vmul.f32 %v527, %v571
    %v574 = vadd.f32 %v415, %v572
    %v575 = vadd.f32 %v416, %v573
    %v576 = vld [vmem:[#allocation2 + $0xc] sm:$0xf]
    %578 = vst [vmem:[#allocation1] ss:$4 sm:$0xff] %v576
    %v579 = vld.sshfl [vmem:[#allocation1] sm:$0xff pattern:$0x73625140]
    %v580 = vld.sshfl [vmem:[#allocation1 + $0x8] sm:$0xff pattern:$0x73625140]
    %583 = vrot.lane.b32.xlu0 %v579, 1
    %v584 = vpop.permute.xlu0 %583
    %585 = vrot.lane.b32.xlu0 %v580, 1
    %v586 = vpop.permute.xlu0 %585
    %v587 = vsel %vm122, %v584, %v586
    %v588 = vsel %vm122, %v586, %v584
    %v589 = vmul.f32 %v588, %v97
    %v590 = vmul.f32 %v587, %v98
    %591 = vst [vmem:[#allocation1] ss:$4 sm:$0xff] %v576
    %v592 = vld.sshfl [vmem:[#allocation1] sm:$0xff pattern:$0x73625140]
    %v593 = vld.sshfl [vmem:[#allocation1 + $0x8] sm:$0xff pattern:$0x73625140]
    %596 = vrot.lane.b32.xlu0 %v592, 127
    %v597 = vpop.permute.xlu0 %596
    %598 = vrot.lane.b32.xlu0 %v593, 127
    %v599 = vpop.permute.xlu0 %598
    %v600 = vsel %vm136, %v597, %v599
    %v601 = vsel %vm136, %v599, %v597
    %v602 = vmul.f32 %v600, %v101
    %v603 = vmul.f32 %v601, %v102
    %s604 = sld [smem:[#allocation6 + $0x180]]
    %v605 = vstv %s604
    %v606 = vmul.f32 %v589, %v605
    %v607 = vmul.f32 %v590, %v605
    %s608 = sld [smem:[#allocation6 + $0x181]]
    %v609 = vstv %s608
    %v610 = vmul.f32 %v576, %v609
    %612 = vst [vmem:[#allocation1] ss:$4 sm:$0xff] %v610
    %v613 = vld.sshfl [vmem:[#allocation1] sm:$0xff pattern:$0x73625140]
    %v614 = vld.sshfl [vmem:[#allocation1 + $0x8] sm:$0xff pattern:$0x73625140]
    %v617 = vadd.f32 %v606, %v613
    %v618 = vadd.f32 %v607, %v614
    %s619 = sld [smem:[#allocation6 + $0x182]]
    %v620 = vstv %s619
    %v621 = vmul.f32 %v602, %v620
    %v622 = vmul.f32 %v603, %v620
    %v623 = vadd.f32 %v617, %v621
    %v624 = vadd.f32 %v618, %v622
    %s625 = sld [smem:[#allocation6 + $0x183]]
    %v626 = vstv %s625
    %v627 = vmul.f32 %v589, %v626
    %v628 = vmul.f32 %v590, %v626
    %s629 = sld [smem:[#allocation6 + $0x184]]
    %v630 = vstv %s629
    %v631 = vmul.f32 %v576, %v630
    %633 = vst [vmem:[#allocation1] ss:$4 sm:$0xff] %v631
    %v634 = vld.sshfl [vmem:[#allocation1] sm:$0xff pattern:$0x73625140]
    %v635 = vld.sshfl [vmem:[#allocation1 + $0x8] sm:$0xff pattern:$0x73625140]
    %v638 = vadd.f32 %v627, %v634
    %v639 = vadd.f32 %v628, %v635
    %s640 = sld [smem:[#allocation6 + $0x185]]
    %v641 = vstv %s640
    %v642 = vmul.f32 %v602, %v641
    %v643 = vmul.f32 %v603, %v641
    %v644 = vadd.f32 %v638, %v642
    %v645 = vadd.f32 %v639, %v643
    %s646 = sld [smem:[#allocation6 + $0x186]]
    %v647 = vstv %s646
    %v648 = vmul.f32 %v589, %v647
    %v649 = vmul.f32 %v590, %v647
    %s650 = sld [smem:[#allocation6 + $0x187]]
    %v651 = vstv %s650
    %v652 = vmul.f32 %v576, %v651
    %654 = vst [vmem:[#allocation1] ss:$4 sm:$0xff] %v652
    %v655 = vld.sshfl [vmem:[#allocation1] sm:$0xff pattern:$0x73625140]
    %v656 = vld.sshfl [vmem:[#allocation1 + $0x8] sm:$0xff pattern:$0x73625140]
    %v659 = vadd.f32 %v648, %v655
    %v660 = vadd.f32 %v649, %v656
    %s661 = sld [smem:[#allocation6 + $0x188]]
    %v662 = vstv %s661
    %v663 = vmul.f32 %v602, %v662
    %v664 = vmul.f32 %v603, %v662
    %v665 = vadd.f32 %v659, %v663
    %v666 = vadd.f32 %v660, %v664
    %667 = vrot.lane.b32.xlu0 %v623, 16
    %v668 = vpop.permute.xlu0 %667
    %669 = vrot.lane.b32.xlu0 %v624, 16
    %v670 = vpop.permute.xlu0 %669
    %v671 = vsel %vm208, %v668, %v670
    %v672 = vsel %vm208, %v670, %v668
    %v673 = vmul.f32 %v105, %v672
    %v674 = vmul.f32 %v106, %v671
    %v675 = vadd.f32 %v644, %v673
    %v676 = vadd.f32 %v645, %v674
    %677 = vrot.lane.b32.xlu0 %v665, 112
    %v678 = vpop.permute.xlu0 %677
    %679 = vrot.lane.b32.xlu0 %v666, 112
    %v680 = vpop.permute.xlu0 %679
    %v681 = vsel %vm219, %v678, %v680
    %v682 = vsel %vm219, %v680, %v678
    %v683 = vmul.f32 %v109, %v681
    %v684 = vmul.f32 %v110, %v682
    %v685 = vadd.f32 %v675, %v683
    %v686 = vadd.f32 %v676, %v684
    %s687 = sld [smem:[#allocation7 + $0x3]]
    %v688 = vstv %s687
    %v689 = vmul.f32 %v685, %v688
    %v690 = vmul.f32 %v686, %v688
    %v691 = vadd.f32 %v532, %v689
    %v692 = vadd.f32 %v533, %v690
    %s693 = sld [smem:[#allocation7 + $0x83]]
    %v694 = vstv %s693
    %v695 = vmul.f32 %v685, %v694
    %v696 = vmul.f32 %v686, %v694
    %v697 = vadd.f32 %v538, %v695
    %v698 = vadd.f32 %v539, %v696
    %s699 = sld [smem:[#allocation7 + $0x103]]
    %v700 = vstv %s699
    %v701 = vmul.f32 %v685, %v700
    %v702 = vmul.f32 %v686, %v700
    %v703 = vadd.f32 %v544, %v701
    %v704 = vadd.f32 %v545, %v702
    %s705 = sld [smem:[#allocation7 + $0x183]]
    %v706 = vstv %s705
    %v707 = vmul.f32 %v685, %v706
    %v708 = vmul.f32 %v686, %v706
    %v709 = vadd.f32 %v550, %v707
    %v710 = vadd.f32 %v551, %v708
    %s711 = sld [smem:[#allocation7 + $0x203]]
    %v712 = vstv %s711
    %v713 = vmul.f32 %v685, %v712
    %v714 = vmul.f32 %v686, %v712
    %v715 = vadd.f32 %v556, %v713
    %v716 = vadd.f32 %v557, %v714
    %s717 = sld [smem:[#allocation7 + $0x283]]
    %v718 = vstv %s717
    %v719 = vmul.f32 %v685, %v718
    %v720 = vmul.f32 %v686, %v718
    %v721 = vadd.f32 %v562, %v719
    %v722 = vadd.f32 %v563, %v720
    %s723 = sld [smem:[#allocation7 + $0x303]]
    %v724 = vstv %s723
    %v725 = vmul.f32 %v685, %v724
    %v726 = vmul.f32 %v686, %v724
    %v727 = vadd.f32 %v568, %v725
    %v728 = vadd.f32 %v569, %v726
    %s729 = sld [smem:[#allocation7 + $0x383]]
    %v730 = vstv %s729
    %v731 = vmul.f32 %v685, %v730
    %v732 = vmul.f32 %v686, %v730
    %v733 = vadd.f32 %v574, %v731
    %v734 = vadd.f32 %v575, %v732
    %s735 = sld [smem:[#allocation9]]
    %v736 = vstv %s735
    %v737 = vadd.f32 %v691, %v736
    %v738 = vadd.f32 %v692, %v736
    %v741 = vrot.slane %v738, 6
    %vm742 = vcmask 1041408
    %v743 = vsel %vm742, %v737, %v741
    %745 = vst [vmem:[#allocation10] sm:$0xf] %v743
    %s746 = sld [smem:[#allocation9 + $0x1]]
    %v747 = vstv %s746
    %v748 = vadd.f32 %v697, %v747
    %v749 = vadd.f32 %v698, %v747
    %v752 = vrot.slane %v749, 6
    %v753 = vsel %vm742, %v748, %v752
    %755 = vst [vmem:[#allocation10 + $0x4] sm:$0xf] %v753
    %s756 = sld [smem:[#allocation9 + $0x2]]
    %v757 = vstv %s756
    %v758 = vadd.f32 %v703, %v757
    %v759 = vadd.f32 %v704, %v757
    %v762 = vrot.slane %v759, 6
    %v763 = vsel %vm742, %v758, %v762
    %765 = vst [vmem:[#allocation10 + $0x8] sm:$0xf] %v763
    %s766 = sld [smem:[#allocation9 + $0x3]]
    %v767 = vstv %s766
    %v768 = vadd.f32 %v709, %v767
    %v769 = vadd.f32 %v710, %v767
    %v772 = vrot.slane %v769, 6
    %v773 = vsel %vm742, %v768, %v772
    %775 = vst [vmem:[#allocation10 + $0xc] sm:$0xf] %v773
    %s776 = sld [smem:[#allocation9 + $0x4]]
    %v777 = vstv %s776
    %v778 = vadd.f32 %v715, %v777
    %v779 = vadd.f32 %v716, %v777
    %v782 = vrot.slane %v779, 6
    %v783 = vsel %vm742, %v778, %v782
    %785 = vst [vmem:[#allocation10 + $0x10] sm:$0xf] %v783
    %s786 = sld [smem:[#allocation9 + $0x5]]
    %v787 = vstv %s786
    %v788 = vadd.f32 %v721, %v787
    %v789 = vadd.f32 %v722, %v787
    %v792 = vrot.slane %v789, 6
    %v793 = vsel %vm742, %v788, %v792
    %795 = vst [vmem:[#allocation10 + $0x14] sm:$0xf] %v793
    %s796 = sld [smem:[#allocation9 + $0x6]]
    %v797 = vstv %s796
    %v798 = vadd.f32 %v727, %v797
    %v799 = vadd.f32 %v728, %v797
    %v802 = vrot.slane %v799, 6
    %v803 = vsel %vm742, %v798, %v802
    %805 = vst [vmem:[#allocation10 + $0x18] sm:$0xf] %v803
    %s806 = sld [smem:[#allocation9 + $0x7]]
    %v807 = vstv %s806
    %v808 = vadd.f32 %v733, %v807
    %v809 = vadd.f32 %v734, %v807
    %v812 = vrot.slane %v809, 6
    %v813 = vsel %vm742, %v808, %v812
    %815 = vst [vmem:[#allocation10 + $0x1c] sm:$0xf] %v813
    // Predicated region
    $region34: #{tpu_custom_call.1} parent=1 // pred_check
      _
    $region35: #{tpu_custom_call.1} parent=1 // pred_check_branch
      %817 = sbr.rel (0) target = $region37
    $region36: #{tpu_custom_call.1} parent=1 // pred_region
      %819 = vsyncadd [#allocation4], 0
      %s821 = sshll.u32 [#allocation10], 4
      %s822 = int_to_ptr.vmem [resolvable:$true] %s821
      %s823 = sshll.u32 %s4, 4
      %s824 = int_to_ptr.hbm [resolvable:$true] %s823
      %826 = dma.vmem_to_hbm [thread:$0]  %s822, 512, %s824, [#allocation4]
    $region37: #{tpu_custom_call.1} parent=1 // pred_fallthru
      _
    // Predicated region
    $region38: #{tpu_custom_call.1} parent=1 // pred_check
      _
    $region39: #{tpu_custom_call.1} parent=1 // pred_check_branch
      %828 = sbr.rel (0) target = $region41
    $region40: #{tpu_custom_call.1} parent=1 // pred_region
      %830 = dma.done [#allocation4], 512
    $region41: #{tpu_custom_call.1} parent=1 // pred_fallthru
      _
    %831 = vsyncpa [#allocation3], 1
    %832 = vsyncpa [#allocation4], 1
    %833 = vsyncpa [#allocation5], 1
    %834 = vsyncpa [#allocation8], 1

</llo_original>
